<compile_context>
chip_gen: v7x
topology: tpu7x:2x2x1
jax: 0.10.0
libtpu: 0.0.40
codegen_flags: <defaults>
</compile_context>

<pallas_src>
import functools

import jax
import jax.numpy as jnp
from jax.experimental import pallas as pl
from jax.experimental.pallas import tpu as pltpu


# ---------------------------------------------------------------------------
# Budgets (bytes)
# ---------------------------------------------------------------------------

_FUSED_VMEM_BUDGET = 28 * 1024 * 1024   # resident estimate for the fused path
_PASS1_BLOCK_BYTES = 8 * 1024 * 1024    # pool pass: only x is streamed
_PASS2_BLOCK_BYTES = 5 * 1024 * 1024    # scale pass: in + out double-buffered
_VMEM_LIMIT_BYTES = 48 * 1024 * 1024    # explicit scoped-VMEM request
                                        # (headroom under v7x 64 MiB physical)


# ---------------------------------------------------------------------------
# Kernels
# ---------------------------------------------------------------------------

def _fused_kernel(x_ref, w1t_ref, b1_ref, w2t_ref, b2_ref, o_ref, *, inv_hw):
    """Fused pool + MLP + scale for one resident (bt, C, HW) slab."""
    xf = x_ref[...].astype(jnp.float32)                          # (bt, C, HW)
    pooled = jnp.sum(xf, axis=-1) * inv_hw                        # (bt, C)
    z = jnp.dot(pooled, w1t_ref[...],
                preferred_element_type=jnp.float32) + b1_ref[...]  # (bt, Cr)
    z = jnp.maximum(z, 0.0)                                        # relu
    s = jnp.dot(z, w2t_ref[...],
                preferred_element_type=jnp.float32) + b2_ref[...]  # (bt, C)
    gate = pl.reciprocal(1.0 + jnp.exp(-s))                        # sigmoid
    o_ref[...] = (xf * gate[:, :, None]).astype(o_ref.dtype)


def _pool_kernel(x_ref, pooled_ref, acc_ref, *, inv_hw, hw, thw, lane_groups):
    """Two-pass path, Pass 1: tiled spatial mean -> pooled (bt, 1, C) f32."""
    h = pl.program_id(1)

    @pl.when(h == 0)
    def _init():
        acc_ref[...] = jnp.zeros_like(acc_ref)

    xb = x_ref[...].astype(jnp.float32)                           # (bt, C, thw)
    if hw % thw != 0:
        # cdiv grid: mask the out-of-bounds tail lanes of the last HW tile.
        lane = jax.lax.broadcasted_iota(jnp.int32, xb.shape, 2)
        valid = hw - h * thw
        xb = jnp.where(lane < valid, xb, 0.0)

    if lane_groups >= 1:
        # VALU-only aligned 128-lane partial sums each step; the single
        # cross-lane (XLU) reduce is deferred to the finalize below.
        partial = xb[:, :, :128]
        for g in range(1, lane_groups):
            partial = partial + xb[:, :, g * 128:(g + 1) * 128]
        acc_ref[...] += partial                                   # (bt, C, 128)
    else:
        acc_ref[...] += jnp.sum(xb, axis=-1, keepdims=True)       # (bt, C, 1)

    @pl.when(h == pl.num_programs(1) - 1)
    def _finalize():
        pooled = jnp.sum(acc_ref[...], axis=-1) * inv_hw           # (bt, C)
        pooled_ref[...] = pooled[:, None, :]                       # (bt, 1, C)


def _scale_kernel(x_ref, gate_ref, o_ref):
    """Two-pass path, Pass 2: out = x * gate (gate broadcast over lanes)."""
    o_ref[...] = (x_ref[...].astype(jnp.float32) * gate_ref[...]).astype(
        o_ref.dtype)


# ---------------------------------------------------------------------------
# Tiling helpers
# ---------------------------------------------------------------------------

def _divisors(n):
    small, large = [], []
    i = 1
    while i * i <= n:
        if n % i == 0:
            small.append(i)
            if i != n // i:
                large.append(n // i)
        i += 1
    return small + large[::-1]


def _pick_hw_tile(hw, c, itemsize, target_bytes):
    """Pick a spatial tile.

    Returns (thw, n_hw, exact). thw is always either the full extent or a
    multiple of 128 (lane-dense, legal block shape). If thw does not divide hw
    exactly, n_hw = cdiv(hw, thw) and the pool kernel masks the padded tail.
    """
    max_t = max(1, target_bytes // max(1, c * itemsize))
    if hw <= max_t:
        return hw, 1, True
    best = 0
    for d in _divisors(hw):
        if d % 128 == 0 and d <= max_t:
            best = d
    if best:
        return best, hw // best, True
    # No multiple-of-128 divisor fits the budget: use a 128-multiple
    # non-divisor tile with a cdiv grid (never fall back to the full extent,
    # which can blow past scoped VMEM for large C * HW).
    thw = max(128, (max_t // 128) * 128)
    return thw, pl.cdiv(hw, thw), False


def _pick_batch_tile(b, c, thw, itemsize, target_bytes):
    """Largest divisor of b whose (bt, C, thw) block stays under the budget."""
    best = 1
    for bt in range(1, b + 1):
        if b % bt == 0 and bt * c * thw * itemsize <= target_bytes:
            best = bt
    return best


def _fused_batch_tile(b, c, hw, itemsize, budget):
    """Largest divisor of b whose fused-path footprint fits; 0 if not viable.

    Footprint per batch row ~ 2x double-buffered input + 2x double-buffered
    output + one f32 temporary slab.
    """
    per_row = c * hw * (4 * itemsize + 4)
    if per_row > budget:
        return 0
    best = 1
    for bt in range(1, b + 1):
        if b % bt == 0 and bt * per_row <= budget:
            best = bt
    return best


# ---------------------------------------------------------------------------
# Wrapper
# ---------------------------------------------------------------------------

def squeeze_excitation(x, w1, b1, w2, b2, *,
                       force_two_pass=False,
                       fused_vmem_budget=_FUSED_VMEM_BUDGET,
                       pass1_block_bytes=_PASS1_BLOCK_BYTES,
                       pass2_block_bytes=_PASS2_BLOCK_BYTES):
    """x: (B, C, H, W); w1: (Cr, C), b1: (Cr,), w2: (C, Cr), b2: (C,)."""
    B, C, H, W = x.shape
    HW = H * W
    Cr = w1.shape[0]
    itemsize = x.dtype.itemsize
    inv_hw = float(1.0 / HW)

    x_flat = x.reshape(B, C, HW)
    # Pre-transpose FC weights once in XLA; kernels / XLA MLP then do plain
    # (rows, in) @ (in, out) matmuls.
    w1t = jnp.transpose(w1).astype(jnp.float32)      # (C, Cr)
    w2t = jnp.transpose(w2).astype(jnp.float32)      # (Cr, C)
    b1f = b1.astype(jnp.float32)
    b2f = b2.astype(jnp.float32)
    b1_2d = b1f.reshape(1, Cr)
    b2_2d = b2f.reshape(1, C)

    # ------------------- fused single-pass path (preferred) ----------------
    if not force_two_pass:
        bt = _fused_batch_tile(B, C, HW, itemsize, fused_vmem_budget)
        if bt:
            n_b = B // bt
            out_flat = pl.pallas_call(
                functools.partial(_fused_kernel, inv_hw=inv_hw),
                out_shape=jax.ShapeDtypeStruct((B, C, HW), x.dtype),
                grid_spec=pltpu.PrefetchScalarGridSpec(
                    num_scalar_prefetch=0,
                    grid=(n_b,),
                    in_specs=[
                        pl.BlockSpec((bt, C, HW), lambda b: (b, 0, 0)),  # x
                        pl.BlockSpec((C, Cr), lambda b: (0, 0)),         # w1.T
                        pl.BlockSpec((1, Cr), lambda b: (0, 0)),         # b1
                        pl.BlockSpec((Cr, C), lambda b: (0, 0)),         # w2.T
                        pl.BlockSpec((1, C), lambda b: (0, 0)),          # b2
                    ],
                    out_specs=pl.BlockSpec((bt, C, HW), lambda b: (b, 0, 0)),
                ),
                compiler_params=pltpu.CompilerParams(
                    dimension_semantics=("parallel",),
                    vmem_limit_bytes=_VMEM_LIMIT_BYTES),
                cost_estimate=pl.CostEstimate(
                    flops=2 * B * C * HW + 4 * B * C * Cr,
                    transcendentals=B * C,
                    bytes_accessed=2 * B * C * HW * itemsize
                                   + (C * Cr + Cr + Cr * C + C) * 4),
            )(x_flat, w1t, b1_2d, w2t, b2_2d)
            return out_flat.reshape(B, C, H, W)

    # ------------------- two-pass fallback (oversized slabs) ---------------
    # Pass 1: tiled spatial mean -> pooled (B, 1, C) f32.
    thw1, n_hw1, _ = _pick_hw_tile(HW, C, itemsize, pass1_block_bytes)
    bt1 = _pick_batch_tile(B, C, thw1, itemsize, pass1_block_bytes)
    n_b1 = B // bt1
    use_lane_acc = (thw1 % 128 == 0) and (thw1 // 128) <= 64
    lane_groups = thw1 // 128 if use_lane_acc else 0
    acc_lanes = 128 if use_lane_acc else 1

    pooled3 = pl.pallas_call(
        functools.partial(_pool_kernel, inv_hw=inv_hw, hw=HW, thw=thw1,
                          lane_groups=lane_groups),
        out_shape=jax.ShapeDtypeStruct((B, 1, C), jnp.float32),
        grid_spec=pltpu.PrefetchScalarGridSpec(
            num_scalar_prefetch=0,
            grid=(n_b1, n_hw1),
            in_specs=[pl.BlockSpec((bt1, C, thw1), lambda b, h: (b, 0, h))],
            out_specs=pl.BlockSpec((bt1, 1, C), lambda b, h: (b, 0, 0)),
            scratch_shapes=[pltpu.VMEM((bt1, C, acc_lanes), jnp.float32)],
        ),
        compiler_params=pltpu.CompilerParams(
            dimension_semantics=("parallel", "arbitrary"),
            vmem_limit_bytes=_VMEM_LIMIT_BYTES),
        cost_estimate=pl.CostEstimate(
            flops=B * C * HW,
            transcendentals=0,
            bytes_accessed=B * C * HW * itemsize + B * C * 4),
    )(x_flat)

    # Tiny excitation MLP + sigmoid in plain XLA (negligible cost; keeps the
    # streaming kernels free of weight residency / tiny MXU matmuls).
    pooled = pooled3.reshape(B, C)
    z = jnp.maximum(pooled @ w1t + b1f, 0.0)
    gate = jax.nn.sigmoid(z @ w2t + b2f)
    gate3 = gate.astype(jnp.float32).reshape(B, C, 1)

    # Pass 2: out = x * gate.
    thw2, n_hw2, _ = _pick_hw_tile(HW, C, itemsize, pass2_block_bytes)
    bt2 = _pick_batch_tile(B, C, thw2, itemsize, pass2_block_bytes)
    n_b2 = B // bt2

    out_flat = pl.pallas_call(
        _scale_kernel,
        out_shape=jax.ShapeDtypeStruct((B, C, HW), x.dtype),
        grid_spec=pltpu.PrefetchScalarGridSpec(
            num_scalar_prefetch=0,
            grid=(n_b2, n_hw2),
            in_specs=[
                pl.BlockSpec((bt2, C, thw2), lambda b, h: (b, 0, h)),  # x
                pl.BlockSpec((bt2, C, 1), lambda b, h: (b, 0, 0)),     # gate
            ],
            out_specs=pl.BlockSpec((bt2, C, thw2), lambda b, h: (b, 0, h)),
        ),
        compiler_params=pltpu.CompilerParams(
            dimension_semantics=("parallel", "parallel"),
            vmem_limit_bytes=_VMEM_LIMIT_BYTES),
        cost_estimate=pl.CostEstimate(
            flops=B * C * HW,
            transcendentals=0,
            bytes_accessed=2 * B * C * HW * itemsize + B * C * 4),
    )(x_flat, gate3)

    return out_flat.reshape(B, C, H, W)


# ---------------------------------------------------------------------------
# Reference + self-test
# ---------------------------------------------------------------------------

def reference(x, w1, b1, w2, b2):
    B, C, H, W = x.shape
    xf = x.astype(jnp.float32)
    y = xf.reshape(B, C, -1).mean(axis=2)
    y = jax.nn.relu(y @ w1.T + b1)
    y = jax.nn.sigmoid(y @ w2.T + b2)
    return (xf * y.reshape(B, C, 1, 1)).astype(x.dtype)


def _make_case(key, B, C, H, W, reduction, dtype):
    Cr = max(1, C // reduction)
    kx, k1, k2, k3, k4 = jax.random.split(key, 5)
    x = jax.random.normal(kx, (B, C, H, W), dtype=jnp.float32).astype(dtype)
    # nn.Linear parameter shapes: weight (out, in), bias (out,)
    w1 = jax.random.normal(k1, (Cr, C), dtype=jnp.float32) * 0.1
    b1 = jax.random.normal(k2, (Cr,), dtype=jnp.float32) * 0.1
    w2 = jax.random.normal(k3, (C, Cr), dtype=jnp.float32) * 0.1
    b2 = jax.random.normal(k4, (C,), dtype=jnp.float32) * 0.1
    return x, w1, b1, w2, b2


if __name__ == "__main__":
    keys = jax.random.split(jax.random.PRNGKey(0), 4)

    # 1) Small f32 case -> fused single-pass path.
    x, w1, b1, w2, b2 = _make_case(keys[0], 2, 32, 8, 8, 16, jnp.float32)
    out = jax.block_until_ready(squeeze_excitation(x, w1, b1, w2, b2))
    ref = reference(x, w1, b1, w2, b2)
    assert out.shape == x.shape and out.dtype == x.dtype
    assert jnp.allclose(out, ref, atol=1e-5, rtol=1e-5), float(
        jnp.max(jnp.abs(out - ref)))

    # 2) bf16 case -> fused path with dtype-aware sizing.
    x, w1, b1, w2, b2 = _make_case(keys[1], 2, 32, 8, 8, 16, jnp.bfloat16)
    out = jax.block_until_ready(squeeze_excitation(x, w1, b1, w2, b2))
    ref = reference(x, w1, b1, w2, b2)
    assert out.dtype == jnp.bfloat16
    assert jnp.allclose(out.astype(jnp.float32), ref.astype(jnp.float32),
                        atol=2e-2, rtol=2e-2)

    # 3) Forced two-pass path with lane-dense (multiple-of-128) HW tiling.
    x, w1, b1, w2, b2 = _make_case(keys[2], 2, 64, 16, 16, 16, jnp.float32)
    out = jax.block_until_ready(squeeze_excitation(
        x, w1, b1, w2, b2, force_two_pass=True,
        pass1_block_bytes=32 * 1024, pass2_block_bytes=32 * 1024))
    ref = reference(x, w1, b1, w2, b2)
    assert jnp.allclose(out, ref, atol=1e-5, rtol=1e-5), float(
        jnp.max(jnp.abs(out - ref)))

    # 4) Forced two-pass, HW=18*18 has no multiple-of-128 divisor -> cdiv grid
    #    with masked pooling and masked edge writes in the scale pass.
    x, w1, b1, w2, b2 = _make_case(keys[3], 2, 32, 18, 18, 16, jnp.float32)
    out = jax.block_until_ready(squeeze_excitation(
        x, w1, b1, w2, b2, force_two_pass=True,
        pass1_block_bytes=16 * 1024, pass2_block_bytes=16 * 1024))
    ref = reference(x, w1, b1, w2, b2)
    assert jnp.allclose(out, ref, atol=1e-5, rtol=1e-5), float(
        jnp.max(jnp.abs(out - ref)))

    print("KERNEL_OK")
</pallas_src>

<mosaic_0001>
module attributes {stable_mosaic.version = 11 : i64} {
  func.func @_fused_kernel(%arg0: i32, %arg1: memref<2x32x64xf32, #tpu.memory_space<vmem>>, %arg2: memref<32x2xf32, #tpu.memory_space<vmem>>, %arg3: memref<1x2xf32, #tpu.memory_space<vmem>>, %arg4: memref<2x32xf32, #tpu.memory_space<vmem>>, %arg5: memref<1x32xf32, #tpu.memory_space<vmem>>, %arg6: memref<2x32x64xf32, #tpu.memory_space<vmem>>) attributes {dimension_semantics = [#tpu.dimension_semantics<parallel>], iteration_bounds = array<i64: 1>, scalar_prefetch = 0 : i64, scratch_operands = 0 : i64, tpu.core_type = #tpu.core_type<tc>, window_params = [{transform_indices = @transform_0, window_bounds = array<i64: 2, 32, 64>}, {pipeline_mode = #tpu.pipeline_mode<synchronous>, transform_indices = @transform_1, window_bounds = array<i64: 32, 2>}, {pipeline_mode = #tpu.pipeline_mode<synchronous>, transform_indices = @transform_2, window_bounds = array<i64: 1, 2>}, {pipeline_mode = #tpu.pipeline_mode<synchronous>, transform_indices = @transform_3, window_bounds = array<i64: 2, 32>}, {pipeline_mode = #tpu.pipeline_mode<synchronous>, transform_indices = @transform_4, window_bounds = array<i64: 1, 32>}, {transform_indices = @transform_5, window_bounds = array<i64: 2, 32, 64>}]} {
    %c0 = arith.constant 0 : index
    %c0_0 = arith.constant 0 : index
    %c0_1 = arith.constant 0 : index
    %0 = vector.load %arg1[%c0, %c0_0, %c0_1] : memref<2x32x64xf32, #tpu.memory_space<vmem>>, vector<2x32x64xf32>
    %cst = arith.constant dense<0.000000e+00> : vector<2x32xf32>
    %1 = vector.multi_reduction <add>, %0, %cst [2] : vector<2x32x64xf32> to vector<2x32xf32>
    %cst_2 = arith.constant 1.562500e-02 : f32
    %2 = vector.broadcast %cst_2 : f32 to vector<2x32xf32>
    %3 = arith.mulf %1, %2 : vector<2x32xf32>
    %c0_3 = arith.constant 0 : index
    %c0_4 = arith.constant 0 : index
    %4 = vector.load %arg2[%c0_3, %c0_4] : memref<32x2xf32, #tpu.memory_space<vmem>>, vector<32x2xf32>
    %cst_5 = arith.constant dense<0.000000e+00> : vector<2x2xf32>
    %5 = tpu.matmul %3, %4, %cst_5 {dimension_numbers = #tpu.dot_dimension_numbers<[1], [0], [0], [1], [0, 0, 1, 1], [], []>} : vector<2x32xf32>, vector<32x2xf32>, vector<2x2xf32> -> vector<2x2xf32>
    %c0_6 = arith.constant 0 : index
    %c0_7 = arith.constant 0 : index
    %6 = vector.load %arg3[%c0_6, %c0_7] : memref<1x2xf32, #tpu.memory_space<vmem>>, vector<1x2xf32>
    %7 = vector.broadcast %6 : vector<1x2xf32> to vector<2x2xf32>
    %8 = arith.addf %5, %7 : vector<2x2xf32>
    %cst_8 = arith.constant 0.000000e+00 : f32
    %9 = vector.broadcast %cst_8 : f32 to vector<2x2xf32>
    %10 = arith.maximumf %8, %9 : vector<2x2xf32>
    %c0_9 = arith.constant 0 : index
    %c0_10 = arith.constant 0 : index
    %11 = vector.load %arg4[%c0_9, %c0_10] : memref<2x32xf32, #tpu.memory_space<vmem>>, vector<2x32xf32>
    %cst_11 = arith.constant dense<0.000000e+00> : vector<2x32xf32>
    %12 = tpu.matmul %10, %11, %cst_11 {dimension_numbers = #tpu.dot_dimension_numbers<[1], [0], [0], [1], [0, 0, 1, 1], [], []>} : vector<2x2xf32>, vector<2x32xf32>, vector<2x32xf32> -> vector<2x32xf32>
    %c0_12 = arith.constant 0 : index
    %c0_13 = arith.constant 0 : index
    %13 = vector.load %arg5[%c0_12, %c0_13] : memref<1x32xf32, #tpu.memory_space<vmem>>, vector<1x32xf32>
    %14 = vector.broadcast %13 : vector<1x32xf32> to vector<2x32xf32>
    %15 = arith.addf %12, %14 : vector<2x32xf32>
    %cst_14 = arith.constant 0.000000e+00 : f32
    %16 = vector.broadcast %cst_14 : f32 to vector<2x32xf32>
    %17 = arith.subf %16, %15 : vector<2x32xf32>
    %18 = math.exp %17 : vector<2x32xf32>
    %cst_15 = arith.constant 1.000000e+00 : f32
    %19 = vector.broadcast %cst_15 : f32 to vector<2x32xf32>
    %20 = arith.addf %19, %18 : vector<2x32xf32>
    %21 = tpu.reciprocal %20 : vector<2x32xf32> -> vector<2x32xf32>
    %22 = vector.shape_cast %21 : vector<2x32xf32> to vector<2x32x1xf32>
    %23 = vector.broadcast %22 : vector<2x32x1xf32> to vector<2x32x64xf32>
    %24 = arith.mulf %0, %23 : vector<2x32x64xf32>
    %c0_16 = arith.constant 0 : index
    %c0_17 = arith.constant 0 : index
    %c0_18 = arith.constant 0 : index
    %25 = vector.load %arg6[%c0_16, %c0_17, %c0_18] : memref<2x32x64xf32, #tpu.memory_space<vmem>>, vector<2x32x64xf32>
    tpu.vector_store %arg6[%c0_16, %c0_17, %c0_18], %24 {strides = array<i32>} : memref<2x32x64xf32, #tpu.memory_space<vmem>>, vector<2x32x64xf32>,
    return
  }
  func.func @transform_0(%arg0: i32) -> (i32, i32, i32) {
    %c0_i32 = arith.constant 0 : i32
    %c0_i32_0 = arith.constant 0 : i32
    %c0_i32_1 = arith.constant 0 : i32
    return %arg0, %c0_i32, %c0_i32_0 : i32, i32, i32
  }
  func.func @transform_1(%arg0: i32) -> (i32, i32) {
    %c0_i32 = arith.constant 0 : i32
    %c0_i32_0 = arith.constant 0 : i32
    %c0_i32_1 = arith.constant 0 : i32
    return %c0_i32, %c0_i32_0 : i32, i32
  }
  func.func @transform_2(%arg0: i32) -> (i32, i32) {
    %c0_i32 = arith.constant 0 : i32
    %c0_i32_0 = arith.constant 0 : i32
    %c0_i32_1 = arith.constant 0 : i32
    return %c0_i32, %c0_i32_0 : i32, i32
  }
  func.func @transform_3(%arg0: i32) -> (i32, i32) {
    %c0_i32 = arith.constant 0 : i32
    %c0_i32_0 = arith.constant 0 : i32
    %c0_i32_1 = arith.constant 0 : i32
    return %c0_i32, %c0_i32_0 : i32, i32
  }
  func.func @transform_4(%arg0: i32) -> (i32, i32) {
    %c0_i32 = arith.constant 0 : i32
    %c0_i32_0 = arith.constant 0 : i32
    %c0_i32_1 = arith.constant 0 : i32
    return %c0_i32, %c0_i32_0 : i32, i32
  }
  func.func @transform_5(%arg0: i32) -> (i32, i32, i32) {
    %c0_i32 = arith.constant 0 : i32
    %c0_i32_0 = arith.constant 0 : i32
    %c0_i32_1 = arith.constant 0 : i32
    return %arg0, %c0_i32, %c0_i32_0 : i32, i32, i32
  }
}

</mosaic_0001>

<llo_original>
// kernel: tpu_custom_call.1
$region0: #{tpu_custom_call.1}
  #allocation0 [shape = 'u32[]', space=smem, size = 0x4, offset = 0x4, fixed_abs, tag = 'smem constant byte address 0x4 - core index']
  #allocation1 [shape = 'u32[144,128]{1,0:T(1,128)}', space=vmem, size = 0x12000, scoped, tag = 'internal scratch']
  %s0 = inlined_call_operand.hbm [shape: f32[2,32,64], index: 0, kind: input, shape index: {}]
  %s1 = inlined_call_operand.vmem [shape: f32[32,2], index: 1, kind: input, shape index: {}]
  %s2 = inlined_call_operand.vmem [shape: f32[1,2], index: 2, kind: input, shape index: {}]
  %s3 = inlined_call_operand.vmem [shape: f32[2,32], index: 3, kind: input, shape index: {}]
  %s4 = inlined_call_operand.vmem [shape: f32[1,32], index: 4, kind: input, shape index: {}]
  %s5 = inlined_call_operand.hbm [shape: f32[2,32,64], index: 5, kind: output, shape index: {}]
  %s6 = sld [smem:[#allocation0]]
  $region34: #{tpu_custom_call.1} parent=0
    _
  %s8 = ssub.s32 1, %s6
  %s9 = scalar_select 0, %s8, %s6
  $region1: #{tpu_custom_call.1} parent=0
    #allocation2 [shape = 'u8[32768]{0}', space=vmem, size = 0x8000, scoped, tag = 'input window, operand 0, single buffered']
    #allocation3 [shape = 's32[1]{0}', space=sflag, size = 0x4, scoped, tag = 'scoped memory for tpu_custom_call.1']
    #allocation4 [shape = 's32[1]{0}', space=sflag, size = 0x4, scoped, tag = 'scoped memory for tpu_custom_call.1']
    #allocation5 [shape = 'u8[32768]{0}', space=vmem, size = 0x8000, scoped, tag = 'output window, operand 0, single buffered']
    %10 = vsyncpa [#allocation3], 0
    %11 = vsyncpa [#allocation4], 0
    // Predicated region
    $region2: #{tpu_custom_call.1} parent=1 // pred_check
      _
    $region3: #{tpu_custom_call.1} parent=1 // pred_check_branch
      %13 = sbr.rel (0) target = $region5
    $region4: #{tpu_custom_call.1} parent=1 // pred_region
      %s15 = ssub.s32 1024, 1024
      %16 = vsyncadd [#allocation3], %s15
      %s17 = sshll.u32 [#allocation2], 4
      %s18 = int_to_ptr.vmem [resolvable:$true] %s17
      %23 = dma.hbm_to_vmem [thread:$0]  %s0, 1024, %s18, [#allocation3], 128, 128, 8
    $region5: #{tpu_custom_call.1} parent=1 // pred_fallthru
      _
    // Predicated region
    $region6: #{tpu_custom_call.1} parent=1 // pred_check
      _
    $region7: #{tpu_custom_call.1} parent=1 // pred_check_branch
      %25 = sbr.rel (0) target = $region9
    $region8: #{tpu_custom_call.1} parent=1 // pred_region
      _
    $region9: #{tpu_custom_call.1} parent=1 // pred_fallthru
      _
    // Predicated region
    $region10: #{tpu_custom_call.1} parent=1 // pred_check
      _
    $region11: #{tpu_custom_call.1} parent=1 // pred_check_branch
      %27 = sbr.rel (0) target = $region13
    $region12: #{tpu_custom_call.1} parent=1 // pred_region
      _
    $region13: #{tpu_custom_call.1} parent=1 // pred_fallthru
      _
    // Predicated region
    $region14: #{tpu_custom_call.1} parent=1 // pred_check
      _
    $region15: #{tpu_custom_call.1} parent=1 // pred_check_branch
      %29 = sbr.rel (0) target = $region17
    $region16: #{tpu_custom_call.1} parent=1 // pred_region
      _
    $region17: #{tpu_custom_call.1} parent=1 // pred_fallthru
      _
    // Predicated region
    $region18: #{tpu_custom_call.1} parent=1 // pred_check
      _
    $region19: #{tpu_custom_call.1} parent=1 // pred_check_branch
      %31 = sbr.rel (0) target = $region21
    $region20: #{tpu_custom_call.1} parent=1 // pred_region
      _
    $region21: #{tpu_custom_call.1} parent=1 // pred_fallthru
      _
    // Predicated region
    $region22: #{tpu_custom_call.1} parent=1 // pred_check
      _
    $region23: #{tpu_custom_call.1} parent=1 // pred_check_branch
      %33 = sbr.rel (0) target = $region25
    $region24: #{tpu_custom_call.1} parent=1 // pred_region
      %34 = dma.done [#allocation3], 1024
    $region25: #{tpu_custom_call.1} parent=1 // pred_fallthru
      _
    %v35 = vld [vmem:[#allocation2] sm:$0xff]
    %v36 = vld [vmem:[#allocation2 + $0x8] sm:$0xff]
    %v37 = vld [vmem:[#allocation2 + $0x10] sm:$0xff]
    %v38 = vld [vmem:[#allocation2 + $0x18] sm:$0xff]
    %v39 = vld [vmem:[#allocation2 + $0x20] sm:$0xff]
    %v40 = vld [vmem:[#allocation2 + $0x28] sm:$0xff]
    %v41 = vld [vmem:[#allocation2 + $0x30] sm:$0xff]
    %v42 = vld [vmem:[#allocation2 + $0x38] sm:$0xff]
    %vm43 = vcmask 523264
    %v44 = vsel %vm43, %v35, 0.0
    %45 = vadd.xlane.f32.xlu0 %v44
    %v46 = vpop.xlane.xlu0 %45
    %v47 = vsel %vm43, %v36, 0.0
    %48 = vadd.xlane.f32.xlu0 %v47
    %v49 = vpop.xlane.xlu0 %48
    %v50 = vsel %vm43, %v37, 0.0
    %51 = vadd.xlane.f32.xlu0 %v50
    %v52 = vpop.xlane.xlu0 %51
    %v53 = vsel %vm43, %v38, 0.0
    %54 = vadd.xlane.f32.xlu0 %v53
    %v55 = vpop.xlane.xlu0 %54
    %v56 = vsel %vm43, %v39, 0.0
    %57 = vadd.xlane.f32.xlu0 %v56
    %v58 = vpop.xlane.xlu0 %57
    %v59 = vsel %vm43, %v40, 0.0
    %60 = vadd.xlane.f32.xlu0 %v59
    %v61 = vpop.xlane.xlu0 %60
    %v62 = vsel %vm43, %v41, 0.0
    %63 = vadd.xlane.f32.xlu0 %v62
    %v64 = vpop.xlane.xlu0 %63
    %v65 = vsel %vm43, %v42, 0.0
    %66 = vadd.xlane.f32.xlu0 %v65
    %v67 = vpop.xlane.xlu0 %66
    %v68 = vmul.f32 %v46, 0.015625
    %v69 = vmul.f32 %v49, 0.015625
    %v70 = vmul.f32 %v52, 0.015625
    %v71 = vmul.f32 %v55, 0.015625
    %v72 = vmul.f32 %v58, 0.015625
    %v73 = vmul.f32 %v61, 0.015625
    %v74 = vmul.f32 %v64, 0.015625
    %v75 = vmul.f32 %v67, 0.015625
    %v76 = vld [vmem:[%s1] sm:$0xff]
    %v77 = vld [vmem:[%s1 + $0x8] sm:$0xff]
    %v78 = vld [vmem:[%s1 + $0x10] sm:$0xff]
    %v79 = vld [vmem:[%s1 + $0x18] sm:$0xff]
    %v80 = vld [vmem:[%s2] sm:$0x1]
    %v82 = vlaneseq
    %v83 = vshrl.u32 %v82, 7
    %v84 = vsub.s32 0, %v83
    %v85 = vrot.slane %v80, %v84
    %v95 = vlaneseq
    %v96 = vand.u32 %v95, 127
    %v97 = vlaneseq
    %v98 = vshrl.u32 %v97, 7
    %v99 = vsub.s32 %v96, %v98
    %v100 = vrot.slane %v68, %v99
    %v101 = vadd.s32 %v96, 4294967288
    %v102 = vlaneseq
    %v103 = vshrl.u32 %v102, 7
    %v104 = vsub.s32 %v101, %v103
    %v105 = vrot.slane %v69, %v104
    %vm106 = vcmask 130112
    %v107 = vsel %vm106, %v105, %v100
    %v108 = vadd.s32 %v96, 4294967280
    %v109 = vlaneseq
    %v110 = vshrl.u32 %v109, 7
    %v111 = vsub.s32 %v108, %v110
    %v112 = vrot.slane %v70, %v111
    %vm113 = vcmask 195712
    %v114 = vsel %vm113, %v112, %v107
    %v115 = vadd.s32 %v96, 4294967272
    %v116 = vlaneseq
    %v117 = vshrl.u32 %v116, 7
    %v118 = vsub.s32 %v115, %v117
    %v119 = vrot.slane %v71, %v118
    %vm120 = vcmask 261312
    %v121 = vsel %vm120, %v119, %v114
    %v122 = vlaneseq
    %v123 = vshrl.u32 %v122, 7
    %v124 = vsub.s32 %v96, %v123
    %v125 = vrot.slane %v72, %v124
    %v126 = vlaneseq
    %v127 = vshrl.u32 %v126, 7
    %v128 = vsub.s32 %v101, %v127
    %v129 = vrot.slane %v73, %v128
    %v130 = vsel %vm106, %v129, %v125
    %v131 = vlaneseq
    %v132 = vshrl.u32 %v131, 7
    %v133 = vsub.s32 %v108, %v132
    %v134 = vrot.slane %v74, %v133
    %v135 = vsel %vm113, %v134, %v130
    %v136 = vlaneseq
    %v137 = vshrl.u32 %v136, 7
    %v138 = vsub.s32 %v115, %v137
    %v139 = vrot.slane %v75, %v138
    %v140 = vsel %vm120, %v139, %v135
    %vm141 = vcmask 1041409
    %v142 = vsel %vm141, %v140, %v121
    %vm143 = vcmask 261120
    %v144 = vsel %vm143, %v142, 0
    %146 = vmatprep.subr.mxu0 0.0
    %147 = vmatpush1.msra.mxu0 %v76
    %148 = vmatprep.subr.mxu0 0.0
    %149 = vmatpush1.msra.mxu0 %v77
    %150 = vmatprep.subr.mxu0 0.0
    %151 = vmatpush1.msra.mxu0 %v78
    %152 = vmatprep.subr.mxu0 0.0
    %153 = vmatpush1.msra.mxu0 %v79
    %154 = vmatprep.subr.mxu0 0.0
    %155 = vmatpush1.msra.mxu0 0.0
    %156 = vmatprep.subr.mxu0 0.0
    %157 = vmatpush1.msra.mxu0 0.0
    %158 = vmatprep.subr.mxu0 0.0
    %159 = vmatpush1.msra.mxu0 0.0
    %160 = vmatprep.subr.mxu0 0.0
    %161 = vmatpush1.msra.mxu0 0.0
    %162 = vmatprep.subr.mxu0 0.0
    %163 = vmatpush1.msra.mxu0 0.0
    %164 = vmatprep.subr.mxu0 0.0
    %165 = vmatpush1.msra.mxu0 0.0
    %166 = vmatprep.subr.mxu0 0.0
    %167 = vmatpush1.msra.mxu0 0.0
    %168 = vmatprep.subr.mxu0 0.0
    %169 = vmatpush1.msra.mxu0 0.0
    %170 = vmatprep.subr.mxu0 0.0
    %171 = vmatpush1.msra.mxu0 0.0
    %172 = vmatprep.subr.mxu0 0.0
    %173 = vmatpush1.msra.mxu0 0.0
    %174 = vmatprep.subr.mxu0 0.0
    %175 = vmatpush1.msra.mxu0 0.0
    %176 = vmatprep.subr.mxu0 0.0
    %177 = vmatpush1.msra.mxu0 0.0
    %178 = vmatprep.subr.mxu0 0.0
    %179 = vmatpush1.msra.mxu0 0.0
    %180 = vmatprep.subr.mxu0 0.0
    %181 = vmatpush1.msra.mxu0 0.0
    %182 = vmatprep.subr.mxu0 0.0
    %183 = vmatpush1.msra.mxu0 0.0
    %184 = vmatprep.subr.mxu0 0.0
    %185 = vmatpush1.msra.mxu0 0.0
    %186 = vmatprep.subr.mxu0 0.0
    %187 = vmatpush1.msra.mxu0 0.0
    %188 = vmatprep.subr.mxu0 0.0
    %189 = vmatpush1.msra.mxu0 0.0
    %190 = vmatprep.subr.mxu0 0.0
    %191 = vmatpush1.msra.mxu0 0.0
    %192 = vmatprep.subr.mxu0 0.0
    %193 = vmatpush1.msra.mxu0 0.0
    %194 = vmatprep.subr.mxu0 0.0
    %195 = vmatpush1.msra.mxu0 0.0
    %196 = vmatprep.subr.mxu0 0.0
    %197 = vmatpush1.msra.mxu0 0.0
    %198 = vmatprep.subr.mxu0 0.0
    %199 = vmatpush1.msra.mxu0 0.0
    %200 = vmatprep.subr.mxu0 0.0
    %201 = vmatpush1.msra.mxu0 0.0
    %202 = vmatprep.subr.mxu0 0.0
    %203 = vmatpush1.msra.mxu0 0.0
    %204 = vmatprep.subr.mxu0 0.0
    %205 = vmatpush1.msra.mxu0 0.0
    %206 = vmatprep.subr.mxu0 0.0
    %207 = vmatpush1.msra.mxu0 0.0
    %208 = vmatprep.subr.mxu0 0.0
    %209 = vmatpush1.msra.mxu0 0.0
    %210 = vmatprep.mubr.f32.mxu0 0.0
    %211 = vmatmul.mubr.f32.gmra.mrb[0].mxu0 %v144
    %v212 = vpop.f32.mrb[0].mxu0
    %v213 = vadd.f32 %v85, %v212
    %v214 = vpop.f32.mrb[0].mxu0
    %215 = vdwg.mxu0
    %v216 = vmax.f32 %v213, 0.0
    %v217 = vld [vmem:[%s3] sm:$0x3]
    %v218 = vld [vmem:[%s4] sm:$0x1]
    %v220 = vlaneseq
    %v221 = vshrl.u32 %v220, 7
    %v222 = vsub.s32 0, %v221
    %v223 = vrot.slane %v218, %v222
    %vm225 = vcmask 15360
    %v227 = vsel %vm225, %v216, 0
    %vm229 = vcmask 1041408
    %v231 = vsel %vm229, %v217, 0
    %233 = vmatprep.subr.mxu0 0.0
    %234 = vmatpush1.msra.mxu0 %v231
    %235 = vmatprep.subr.mxu0 0.0
    %236 = vmatpush1.msra.mxu0 0.0
    %237 = vmatprep.subr.mxu0 0.0
    %238 = vmatpush1.msra.mxu0 0.0
    %239 = vmatprep.subr.mxu0 0.0
    %240 = vmatpush1.msra.mxu0 0.0
    %241 = vmatprep.subr.mxu0 0.0
    %242 = vmatpush1.msra.mxu0 0.0
    %243 = vmatprep.subr.mxu0 0.0
    %244 = vmatpush1.msra.mxu0 0.0
    %245 = vmatprep.subr.mxu0 0.0
    %246 = vmatpush1.msra.mxu0 0.0
    %247 = vmatprep.subr.mxu0 0.0
    %248 = vmatpush1.msra.mxu0 0.0
    %249 = vmatprep.subr.mxu0 0.0
    %250 = vmatpush1.msra.mxu0 0.0
    %251 = vmatprep.subr.mxu0 0.0
    %252 = vmatpush1.msra.mxu0 0.0
    %253 = vmatprep.subr.mxu0 0.0
    %254 = vmatpush1.msra.mxu0 0.0
    %255 = vmatprep.subr.mxu0 0.0
    %256 = vmatpush1.msra.mxu0 0.0
    %257 = vmatprep.subr.mxu0 0.0
    %258 = vmatpush1.msra.mxu0 0.0
    %259 = vmatprep.subr.mxu0 0.0
    %260 = vmatpush1.msra.mxu0 0.0
    %261 = vmatprep.subr.mxu0 0.0
    %262 = vmatpush1.msra.mxu0 0.0
    %263 = vmatprep.subr.mxu0 0.0
    %264 = vmatpush1.msra.mxu0 0.0
    %265 = vmatprep.subr.mxu0 0.0
    %266 = vmatpush1.msra.mxu0 0.0
    %267 = vmatprep.subr.mxu0 0.0
    %268 = vmatpush1.msra.mxu0 0.0
    %269 = vmatprep.subr.mxu0 0.0
    %270 = vmatpush1.msra.mxu0 0.0
    %271 = vmatprep.subr.mxu0 0.0
    %272 = vmatpush1.msra.mxu0 0.0
    %273 = vmatprep.subr.mxu0 0.0
    %274 = vmatpush1.msra.mxu0 0.0
    %275 = vmatprep.subr.mxu0 0.0
    %276 = vmatpush1.msra.mxu0 0.0
    %277 = vmatprep.subr.mxu0 0.0
    %278 = vmatpush1.msra.mxu0 0.0
    %279 = vmatprep.subr.mxu0 0.0
    %280 = vmatpush1.msra.mxu0 0.0
    %281 = vmatprep.subr.mxu0 0.0
    %282 = vmatpush1.msra.mxu0 0.0
    %283 = vmatprep.subr.mxu0 0.0
    %284 = vmatpush1.msra.mxu0 0.0
    %285 = vmatprep.subr.mxu0 0.0
    %286 = vmatpush1.msra.mxu0 0.0
    %287 = vmatprep.subr.mxu0 0.0
    %288 = vmatpush1.msra.mxu0 0.0
    %289 = vmatprep.subr.mxu0 0.0
    %290 = vmatpush1.msra.mxu0 0.0
    %291 = vmatprep.subr.mxu0 0.0
    %292 = vmatpush1.msra.mxu0 0.0
    %293 = vmatprep.subr.mxu0 0.0
    %294 = vmatpush1.msra.mxu0 0.0
    %295 = vmatprep.subr.mxu0 0.0
    %296 = vmatpush1.msra.mxu0 0.0
    %297 = vmatprep.mubr.f32.mxu0 0.0
    %298 = vmatmul.mubr.f32.gmra.mrb[0].mxu0 %v227
    %v299 = vpop.f32.mrb[0].mxu0
    %v300 = vadd.f32 %v223, %v299
    %v301 = vpop.f32.mrb[0].mxu0
    %302 = vdwg.mxu0
    %v303 = vsub.f32 0.0, %v300
    %v304 = vmul.f32 %v303, 1.442695
    %v305 = vpow.pop %v304
    %v306 = vadd.f32 %v305, 1.0
    %v307 = vrcp.pop %v306
    %v308 = vlaneseq
    %v309 = vshrl.u32 %v308, 7
    %v310 = vsub.s32 0, %v309
    %v311 = vrot.slane %v307, %v310
    %313 = vbcast.lane.b32.xlu0 %v311, 256
    %v314 = vpop.permute.xlu0 %313
    %s316 = sor.u32 256, 8
    %317 = vbcast.lane.b32.xlu0 %v311, %s316
    %v318 = vpop.permute.xlu0 %317
    %s320 = sor.u32 256, 16
    %321 = vbcast.lane.b32.xlu0 %v311, %s320
    %v322 = vpop.permute.xlu0 %321
    %s324 = sor.u32 256, 24
    %325 = vbcast.lane.b32.xlu0 %v311, %s324
    %v326 = vpop.permute.xlu0 %325
    %v327 = vlaneseq
    %v328 = vshrl.u32 %v327, 7
    %v329 = vsub.s32 1, %v328
    %v330 = vrot.slane %v307, %v329
    %332 = vbcast.lane.b32.xlu0 %v330, 256
    %v333 = vpop.permute.xlu0 %332
    %s335 = sor.u32 256, 8
    %336 = vbcast.lane.b32.xlu0 %v330, %s335
    %v337 = vpop.permute.xlu0 %336
    %s339 = sor.u32 256, 16
    %340 = vbcast.lane.b32.xlu0 %v330, %s339
    %v341 = vpop.permute.xlu0 %340
    %s343 = sor.u32 256, 24
    %344 = vbcast.lane.b32.xlu0 %v330, %s343
    %v345 = vpop.permute.xlu0 %344
    %v346 = vmul.f32 %v35, %v314
    %v347 = vmul.f32 %v36, %v318
    %v348 = vmul.f32 %v37, %v322
    %v349 = vmul.f32 %v38, %v326
    %v350 = vmul.f32 %v39, %v333
    %v351 = vmul.f32 %v40, %v337
    %v352 = vmul.f32 %v41, %v341
    %v353 = vmul.f32 %v42, %v345
    %354 = vst.msk [vmem:[#allocation5] sm:$0xff] %vm43, %v346
    %355 = vst.msk [vmem:[#allocation5 + $0x8] sm:$0xff] %vm43, %v347
    %356 = vst.msk [vmem:[#allocation5 + $0x10] sm:$0xff] %vm43, %v348
    %357 = vst.msk [vmem:[#allocation5 + $0x18] sm:$0xff] %vm43, %v349
    %358 = vst.msk [vmem:[#allocation5 + $0x20] sm:$0xff] %vm43, %v350
    %359 = vst.msk [vmem:[#allocation5 + $0x28] sm:$0xff] %vm43, %v351
    %360 = vst.msk [vmem:[#allocation5 + $0x30] sm:$0xff] %vm43, %v352
    %361 = vst.msk [vmem:[#allocation5 + $0x38] sm:$0xff] %vm43, %v353
    // Predicated region
    $region26: #{tpu_custom_call.1} parent=1 // pred_check
      _
    $region27: #{tpu_custom_call.1} parent=1 // pred_check_branch
      %363 = sbr.rel (0) target = $region29
    $region28: #{tpu_custom_call.1} parent=1 // pred_region
      %s365 = ssub.s32 1024, 1024
      %366 = vsyncadd [#allocation4], %s365
      %s367 = sshll.u32 [#allocation5], 4
      %s368 = int_to_ptr.vmem [resolvable:$true] %s367
      %373 = dma.vmem_to_hbm [thread:$0]  %s368, 1024, %s5, [#allocation4], 128, 128, 8
    $region29: #{tpu_custom_call.1} parent=1 // pred_fallthru
      _
    // Predicated region
    $region30: #{tpu_custom_call.1} parent=1 // pred_check
      _
    $region31: #{tpu_custom_call.1} parent=1 // pred_check_branch
      %375 = sbr.rel (0) target = $region33
    $region32: #{tpu_custom_call.1} parent=1 // pred_region
      %376 = dma.done [#allocation4], 1024
    $region33: #{tpu_custom_call.1} parent=1 // pred_fallthru
      _
    %377 = vsyncpa [#allocation3], 1
    %378 = vsyncpa [#allocation4], 1

</llo_original>
